<compile_context>
chip_gen: v6e
topology: v6e:2x2x1
jax: 0.10.0
libtpu: 0.0.40
codegen_flags: <defaults>
</compile_context>

<pallas_src>
import functools
import math

import jax
import jax.numpy as jnp
from jax.experimental import pallas as pl
from jax.experimental.pallas import tpu as pltpu

_LN_EPS = 1e-5  # matches nn.LayerNorm default


# ----------------------------------------------------------------------------
# Per-chip sizing
# ----------------------------------------------------------------------------
def _vmem_capacity_bytes():
    try:
        info = pltpu.get_tpu_info()
        cap = getattr(info, "vmem_capacity_bytes", None)
        if cap:
            return int(cap)
    except Exception:
        pass
    return 64 << 20  # conservative (v7x-sized) fallback


_VMEM_CAP = _vmem_capacity_bytes()
_VMEM_LIMIT = int(_VMEM_CAP * 3 // 4)        # ~96 MiB on v5e/v6e, ~48 MiB on v7x
_DEFAULT_BLOCK_M = 512 if _VMEM_CAP >= (100 << 20) else 256
_DEFAULT_BLOCK_N = 1536


def _choose_m_tile(M, block_m):
    """Ragged-M fallback: largest divisor of M that is <= block_m and a
    multiple of 8, so a single oversized full-M block never blows VMEM."""
    if M % block_m == 0:
        return block_m
    for t in range(min(block_m, M), 7, -1):
        if M % t == 0 and t % 8 == 0:
            return t
    return M


def _choose_n_tile(N, block_n):
    """Cap resident weight VMEM: largest 128-multiple divisor of N <= block_n."""
    if N <= block_n:
        return N
    for t in range(block_n - (block_n % 128), 127, -128):
        if N % t == 0:
            return t
    return N


def _batch_rows_per_block(B, S, D, itemsize=2, streams=3,
                          budget_bytes=_VMEM_LIMIT // 2):
    """Batch rows fused per grid step for the embedding+LN kernel (amortizes
    the ~0.35us per-step pipeline overhead while staying inside scoped VMEM)."""
    per_row = S * D * itemsize * streams * 2  # x2 double buffering
    bb = max(1, min(B, budget_bytes // max(per_row, 1)))
    while B % bb:  # keep every block full -> unmasked stores
        bb -= 1
    return bb


def _layernorm_f32(h, gamma, beta, eps=_LN_EPS):
    mu = jnp.mean(h, axis=-1, keepdims=True)
    var = jnp.mean((h - mu) ** 2, axis=-1, keepdims=True)
    return (h - mu) * jax.lax.rsqrt(var + eps) * gamma + beta


# ----------------------------------------------------------------------------
# Kernel 1: fused embedding sum + LayerNorm (bf16 in/out, f32 statistics)
# ----------------------------------------------------------------------------
def _emb_ln_kernel(tok_ref, pos_ref, seg_ref, g_ref, b_ref, o_ref):
    h = (tok_ref[...].astype(jnp.float32)
         + pos_ref[...].astype(jnp.float32)          # (S, D) broadcast over batch
         + seg_ref[...].astype(jnp.float32))
    o_ref[...] = _layernorm_f32(h, g_ref[...], b_ref[...]).astype(o_ref.dtype)


def embed_layernorm(tok_emb, pos_emb, seg_emb, gamma, beta):
    B, S, D = tok_emb.shape
    bb = _batch_rows_per_block(B, S, D, itemsize=tok_emb.dtype.itemsize)
    return pl.pallas_call(
        _emb_ln_kernel,
        out_shape=jax.ShapeDtypeStruct((B, S, D), tok_emb.dtype),
        grid=(B // bb,),
        in_specs=[
            pl.BlockSpec((bb, S, D), lambda i: (i, 0, 0)),
            pl.BlockSpec((S, D), lambda i: (0, 0)),     # resident, reused each step
            pl.BlockSpec((bb, S, D), lambda i: (i, 0, 0)),
            pl.BlockSpec((1, D), lambda i: (0, 0)),
            pl.BlockSpec((1, D), lambda i: (0, 0)),
        ],
        out_specs=pl.BlockSpec((bb, S, D), lambda i: (i, 0, 0)),
        compiler_params=pltpu.CompilerParams(
            dimension_semantics=("parallel",), vmem_limit_bytes=_VMEM_LIMIT),
    )(tok_emb, pos_emb, seg_emb, gamma.reshape(1, D), beta.reshape(1, D))


# ----------------------------------------------------------------------------
# Kernel 2: linear (matmul + bias + optional activation), M- and N-tiled
# ----------------------------------------------------------------------------
@functools.lru_cache(maxsize=None)
def _make_linear_kernel(activation):
    def kernel(x_ref, w_ref, b_ref, o_ref):
        acc = jnp.dot(x_ref[...], w_ref[...], preferred_element_type=jnp.float32)
        acc = acc + b_ref[...].astype(jnp.float32)
        if activation == "relu":
            acc = jnp.maximum(acc, 0.0)
        elif activation == "tanh":
            acc = jnp.tanh(acc)
        o_ref[...] = acc.astype(o_ref.dtype)
    return kernel


def linear(x, w, b, activation=None, block_m=_DEFAULT_BLOCK_M,
           block_n=_DEFAULT_BLOCK_N):
    """out = act(x @ w + b).  x: (M, K) bf16, w: (K, N) bf16, b: (N,) f32."""
    M, K = x.shape
    _, N = w.shape
    tm = _choose_m_tile(M, block_m)
    tn = _choose_n_tile(N, block_n)
    ce = pl.CostEstimate(
        flops=2 * M * K * N,
        transcendentals=M * N if activation == "tanh" else 0,
        bytes_accessed=(M * K + K * N + M * N) * x.dtype.itemsize + N * 4)
    return pl.pallas_call(
        _make_linear_kernel(activation),
        out_shape=jax.ShapeDtypeStruct((M, N), x.dtype),
        grid=(M // tm, N // tn),
        in_specs=[
            pl.BlockSpec((tm, K), lambda i, j: (i, 0)),
            # TODO(synk): on v7x mark weight/bias with pipeline_mode=pl.Buffered(1)
            # to drop the dead second buffer of these constant-index blocks.
            pl.BlockSpec((K, tn), lambda i, j: (0, j)),
            pl.BlockSpec((1, tn), lambda i, j: (0, j)),
        ],
        out_specs=pl.BlockSpec((tm, tn), lambda i, j: (i, j)),
        compiler_params=pltpu.CompilerParams(
            dimension_semantics=("parallel", "parallel"),
            vmem_limit_bytes=_VMEM_LIMIT),
        cost_estimate=ce,
    )(x, w, b.reshape(1, N))


# ----------------------------------------------------------------------------
# Kernel 3: linear + residual add + LayerNorm epilogue (W_o and W2 paths)
# ----------------------------------------------------------------------------
def _linear_add_ln_kernel(x_ref, w_ref, b_ref, r_ref, g_ref, bt_ref, o_ref):
    acc = jnp.dot(x_ref[...], w_ref[...], preferred_element_type=jnp.float32)
    acc = acc + b_ref[...].astype(jnp.float32)
    h = r_ref[...].astype(jnp.float32) + acc
    o_ref[...] = _layernorm_f32(h, g_ref[...], bt_ref[...]).astype(o_ref.dtype)


def linear_add_ln(x, w, b, residual, gamma, beta, block_m=_DEFAULT_BLOCK_M):
    """out = LayerNorm(residual + x @ w + b).  LN is over the full row, so only
    the M axis is tiled (N == d_model stays small)."""
    M, K = x.shape
    _, N = w.shape
    tm = _choose_m_tile(M, block_m)
    ce = pl.CostEstimate(
        flops=2 * M * K * N,
        transcendentals=0,
        bytes_accessed=(M * K + K * N + 2 * M * N) * x.dtype.itemsize + 3 * N * 4)
    return pl.pallas_call(
        _linear_add_ln_kernel,
        out_shape=jax.ShapeDtypeStruct((M, N), x.dtype),
        grid=(M // tm,),
        in_specs=[
            pl.BlockSpec((tm, K), lambda i: (i, 0)),
            pl.BlockSpec((K, N), lambda i: (0, 0)),     # weight resident in VMEM
            pl.BlockSpec((1, N), lambda i: (0, 0)),
            pl.BlockSpec((tm, N), lambda i: (i, 0)),    # residual, same tiling as out
            pl.BlockSpec((1, N), lambda i: (0, 0)),
            pl.BlockSpec((1, N), lambda i: (0, 0)),
        ],
        out_specs=pl.BlockSpec((tm, N), lambda i: (i, 0)),
        compiler_params=pltpu.CompilerParams(
            dimension_semantics=("parallel",), vmem_limit_bytes=_VMEM_LIMIT),
        cost_estimate=ce,
    )(x, w, b.reshape(1, N), residual, gamma.reshape(1, N), beta.reshape(1, N))


# ----------------------------------------------------------------------------
# Kernel 4: fused attention on the lane-dense (S, 3D) QKV slab, per batch row
# ----------------------------------------------------------------------------
@functools.lru_cache(maxsize=None)
def _make_attention_kernel(num_heads, dk, d_model):
    scale = 1.0 / math.sqrt(dk)

    def kernel(qkv_ref, m_ref, o_ref):
        qkv = qkv_ref[0]                      # (S, 3D) bf16, lane-dense
        mask = m_ref[0].astype(jnp.float32)   # (1, S) additive mask
        head_outs = []
        # Heads are sliced from the lane axis in-VMEM (no HBM transposes).
        # TODO(synk): for S >= ~1024, replace the materialized (S, S) scores with
        # an online-softmax (flash) loop over KV tiles.
        for h in range(num_heads):
            qh = qkv[:, h * dk:(h + 1) * dk]
            kh = qkv[:, d_model + h * dk:d_model + (h + 1) * dk]
            vh = qkv[:, 2 * d_model + h * dk:2 * d_model + (h + 1) * dk]
            s = jnp.dot(qh, kh.T, preferred_element_type=jnp.float32) * scale
            s = s + mask
            s = s - jnp.max(s, axis=-1, keepdims=True)
            p = jnp.exp(s)
            p = p * pl.reciprocal(jnp.sum(p, axis=-1, keepdims=True), approx=True)
            head_outs.append(
                jnp.dot(p.astype(qkv.dtype), vh, preferred_element_type=jnp.float32))
        # Single lane-dense (S, D) store (unmasked full-width vst).
        o_ref[0] = jnp.concatenate(head_outs, axis=-1).astype(o_ref.dtype)

    return kernel


def attention(qkv, mask, num_heads):
    """qkv: (B, S, 3*D) bf16 packed [Q|K|V]; mask: (B, 1, S) additive f32."""
    B, S, threeD = qkv.shape
    D = threeD // 3
    dk = D // num_heads
    ce = pl.CostEstimate(
        flops=4 * B * num_heads * S * S * dk,
        transcendentals=B * num_heads * S * S,
        bytes_accessed=B * S * (threeD + D) * qkv.dtype.itemsize + B * S * 4)
    return pl.pallas_call(
        _make_attention_kernel(num_heads, dk, D),
        out_shape=jax.ShapeDtypeStruct((B, S, D), qkv.dtype),
        grid=(B,),
        in_specs=[
            pl.BlockSpec((1, S, threeD), lambda b: (b, 0, 0)),
            pl.BlockSpec((1, 1, S), lambda b: (b, 0, 0)),
        ],
        out_specs=pl.BlockSpec((1, S, D), lambda b: (b, 0, 0)),
        compiler_params=pltpu.CompilerParams(
            dimension_semantics=("parallel",), vmem_limit_bytes=_VMEM_LIMIT),
        cost_estimate=ce,
    )(qkv, mask)


# ----------------------------------------------------------------------------
# Model forward (glue around the kernels)
# ----------------------------------------------------------------------------
def encoder_layer(x, mask, p, num_heads):
    B, S, D = x.shape
    xf = x.reshape(B * S, D)

    # Fused Q/K/V projection: one pass over the activations, one big MXU call.
    qkv = linear(xf, p["w_qkv"], p["b_qkv"]).reshape(B, S, 3 * D)
    attn = attention(qkv, mask, num_heads)                     # (B, S, D) lane-dense
    # W_o + residual + LayerNorm fused in one kernel epilogue.
    x = linear_add_ln(attn.reshape(B * S, D), p["wo"], p["bo"], xf,
                      p["ln1_g"], p["ln1_b"])

    # FFN: fc1(+relu) then fc2 + residual + LayerNorm fused.
    h = linear(x, p["w1"], p["b1"], activation="relu")
    x = linear_add_ln(h, p["w2"], p["b2"], x, p["ln2_g"], p["ln2_b"])
    return x.reshape(B, S, D)


def bert(params, input_ids, segment_ids=None, attention_mask=None):
    B, S = input_ids.shape
    assert S <= params["pos_emb"].shape[0], "sequence length exceeds max_seq_length"
    if segment_ids is None:
        segment_ids = jnp.zeros_like(input_ids)

    # Embedding gathers are glue; the 3-way sum + LayerNorm is one fused kernel.
    tok = jnp.take(params["tok_emb"], input_ids, axis=0)        # (B, S, D) bf16
    seg = jnp.take(params["seg_emb"], segment_ids, axis=0)      # (B, S, D) bf16
    pos = params["pos_emb"][:S]                                 # (S, D), broadcast in-kernel
    x = embed_layernorm(tok, pos, seg, params["emb_ln_g"], params["emb_ln_b"])
    # TODO(synk): dropout layers are identity at inference and are omitted.

    if attention_mask is not None:
        mask = (1.0 - attention_mask.astype(jnp.float32))[:, None, :] * -1e9
    else:
        mask = jnp.zeros((B, 1, S), jnp.float32)

    for p in params["layers"]:
        x = encoder_layer(x, mask, p, params["num_heads"])

    pooled = linear(x[:, 0, :], params["pooler_w"], params["pooler_b"],
                    activation="tanh")
    return x, pooled


def bert_for_sequence_classification(params, input_ids, segment_ids=None,
                                     attention_mask=None):
    _, pooled = bert(params, input_ids, segment_ids, attention_mask)
    return linear(pooled, params["cls_w"], params["cls_b"])


# ----------------------------------------------------------------------------
# Parameter init (bf16 weights, f32 biases / LN params) + pure-JAX f32 reference
# ----------------------------------------------------------------------------
def init_params(key, vocab_size, num_classes, d_model, num_layers, num_heads,
                d_ff, max_seq_length, init_scale=0.02, dtype=jnp.bfloat16):
    keys = jax.random.split(key, 5 + num_layers)

    def dense(k, fan_in, fan_out):
        kw, kb = jax.random.split(k)
        w = (jax.random.normal(kw, (fan_in, fan_out), jnp.float32) * init_scale).astype(dtype)
        b = jax.random.normal(kb, (fan_out,), jnp.float32) * init_scale
        return w, b

    params = {
        "tok_emb": (jax.random.normal(keys[0], (vocab_size, d_model), jnp.float32)
                    * init_scale).astype(dtype),
        "pos_emb": (jax.random.normal(keys[1], (max_seq_length, d_model), jnp.float32)
                    * init_scale).astype(dtype),
        "seg_emb": (jax.random.normal(keys[2], (2, d_model), jnp.float32)
                    * init_scale).astype(dtype),
        "emb_ln_g": jnp.ones((d_model,), jnp.float32),
        "emb_ln_b": jnp.zeros((d_model,), jnp.float32),
        "num_heads": num_heads,
        "layers": [],
    }
    for layer_idx in range(num_layers):
        lk = jax.random.split(keys[3 + layer_idx], 4)
        w_qkv, b_qkv = dense(lk[0], d_model, 3 * d_model)   # fused [Wq|Wk|Wv]
        wo, bo = dense(lk[1], d_model, d_model)
        w1, b1 = dense(lk[2], d_model, d_ff)
        w2, b2 = dense(lk[3], d_ff, d_model)
        params["layers"].append({
            "w_qkv": w_qkv, "b_qkv": b_qkv,
            "wo": wo, "bo": bo,
            "ln1_g": jnp.ones((d_model,), jnp.float32),
            "ln1_b": jnp.zeros((d_model,), jnp.float32),
            "w1": w1, "b1": b1, "w2": w2, "b2": b2,
            "ln2_g": jnp.ones((d_model,), jnp.float32),
            "ln2_b": jnp.zeros((d_model,), jnp.float32),
        })
    pw, pb = dense(keys[3 + num_layers], d_model, d_model)
    cw, cb = dense(keys[4 + num_layers], d_model, num_classes)
    params.update({"pooler_w": pw, "pooler_b": pb, "cls_w": cw, "cls_b": cb})
    return params


def ref_forward(params, input_ids, segment_ids=None, attention_mask=None):
    """Pure-JAX f32 reference computed from the same (bf16-quantized) params."""
    f = lambda t: t.astype(jnp.float32)
    B, S = input_ids.shape
    D = params["tok_emb"].shape[1]
    H = params["num_heads"]
    dk = D // H
    if segment_ids is None:
        segment_ids = jnp.zeros_like(input_ids)

    def ln(h, g, b):
        mu = jnp.mean(h, axis=-1, keepdims=True)
        var = jnp.mean((h - mu) ** 2, axis=-1, keepdims=True)
        return (h - mu) / jnp.sqrt(var + _LN_EPS) * g + b

    x = (f(params["tok_emb"])[input_ids] + f(params["pos_emb"])[:S][None]
         + f(params["seg_emb"])[segment_ids])
    x = ln(x, params["emb_ln_g"], params["emb_ln_b"])
    if attention_mask is not None:
        mask = (1.0 - attention_mask.astype(jnp.float32))[:, None, None, :] * -1e9
    else:
        mask = jnp.zeros((B, 1, 1, S), jnp.float32)

    for p in params["layers"]:
        qkv = x @ f(p["w_qkv"]) + p["b_qkv"]
        q, k, v = qkv[..., :D], qkv[..., D:2 * D], qkv[..., 2 * D:]

        def heads(t):
            return t.reshape(B, S, H, dk).transpose(0, 2, 1, 3)
        q, k, v = heads(q), heads(k), heads(v)
        s = jnp.einsum("bhqd,bhkd->bhqk", q, k) / math.sqrt(dk) + mask
        a = jax.nn.softmax(s, axis=-1)
        o = jnp.einsum("bhqk,bhkd->bhqd", a, v).transpose(0, 2, 1, 3).reshape(B, S, D)
        o = o @ f(p["wo"]) + p["bo"]
        x = ln(x + o, p["ln1_g"], p["ln1_b"])
        h = jnp.maximum(x @ f(p["w1"]) + p["b1"], 0.0) @ f(p["w2"]) + p["b2"]
        x = ln(x + h, p["ln2_g"], p["ln2_b"])

    pooled = jnp.tanh(x[:, 0] @ f(params["pooler_w"]) + params["pooler_b"])
    logits = pooled @ f(params["cls_w"]) + params["cls_b"]
    return x, logits


# ----------------------------------------------------------------------------
if __name__ == "__main__":
    vocab_size, num_classes = 100, 3
    d_model, num_layers, num_heads, d_ff, max_seq_length = 32, 2, 4, 64, 64
    B, S = 2, 8

    key = jax.random.PRNGKey(0)
    pkey, ikey = jax.random.split(key)
    params = init_params(pkey, vocab_size, num_classes, d_model, num_layers,
                         num_heads, d_ff, max_seq_length)

    input_ids = jax.random.randint(ikey, (B, S), 0, vocab_size, dtype=jnp.int32)
    segment_ids = jnp.concatenate(
        [jnp.zeros((B, S // 2), jnp.int32), jnp.ones((B, S - S // 2), jnp.int32)], axis=1)
    attention_mask = jnp.ones((B, S), jnp.float32).at[:, -2:].set(0.0)

    x, pooled = bert(params, input_ids, segment_ids, attention_mask)
    logits = bert_for_sequence_classification(params, input_ids, segment_ids, attention_mask)
    jax.block_until_ready((x, pooled, logits))

    x_ref, logits_ref = ref_forward(params, input_ids, segment_ids, attention_mask)
    assert logits.shape == (B, num_classes)
    assert jnp.allclose(x.astype(jnp.float32), x_ref, atol=3e-2, rtol=3e-2), (
        "encoder output mismatch, max abs diff = %f"
        % float(jnp.max(jnp.abs(x.astype(jnp.float32) - x_ref))))
    assert jnp.allclose(logits.astype(jnp.float32), logits_ref, atol=3e-2, rtol=3e-2), (
        "logits mismatch, max abs diff = %f"
        % float(jnp.max(jnp.abs(logits.astype(jnp.float32) - logits_ref))))
    print("KERNEL_OK")
</pallas_src>

<mosaic_0001>
module attributes {stable_mosaic.version = 11 : i64} {
  func.func @_emb_ln_kernel(%arg0: i32, %arg1: memref<2x8x32xbf16, #tpu.memory_space<vmem>>, %arg2: memref<8x32xbf16, #tpu.memory_space<vmem>>, %arg3: memref<2x8x32xbf16, #tpu.memory_space<vmem>>, %arg4: memref<1x32xf32, #tpu.memory_space<vmem>>, %arg5: memref<1x32xf32, #tpu.memory_space<vmem>>, %arg6: memref<2x8x32xbf16, #tpu.memory_space<vmem>>) attributes {dimension_semantics = [#tpu.dimension_semantics<parallel>], iteration_bounds = array<i64: 1>, scalar_prefetch = 0 : i64, scratch_operands = 0 : i64, tpu.core_type = #tpu.core_type<tc>, window_params = [{transform_indices = @transform_0, window_bounds = array<i64: 2, 8, 32>}, {pipeline_mode = #tpu.pipeline_mode<synchronous>, transform_indices = @transform_1, window_bounds = array<i64: 8, 32>}, {transform_indices = @transform_2, window_bounds = array<i64: 2, 8, 32>}, {pipeline_mode = #tpu.pipeline_mode<synchronous>, transform_indices = @transform_3, window_bounds = array<i64: 1, 32>}, {pipeline_mode = #tpu.pipeline_mode<synchronous>, transform_indices = @transform_4, window_bounds = array<i64: 1, 32>}, {transform_indices = @transform_5, window_bounds = array<i64: 2, 8, 32>}]} {
    %c0 = arith.constant 0 : index
    %c0_0 = arith.constant 0 : index
    %c0_1 = arith.constant 0 : index
    %0 = vector.load %arg1[%c0, %c0_0, %c0_1] : memref<2x8x32xbf16, #tpu.memory_space<vmem>>, vector<2x8x32xbf16>
    %1 = arith.extf %0 : vector<2x8x32xbf16> to vector<2x8x32xf32>
    %c0_2 = arith.constant 0 : index
    %c0_3 = arith.constant 0 : index
    %2 = vector.load %arg2[%c0_2, %c0_3] : memref<8x32xbf16, #tpu.memory_space<vmem>>, vector<8x32xbf16>
    %3 = arith.extf %2 : vector<8x32xbf16> to vector<8x32xf32>
    %4 = vector.shape_cast %3 : vector<8x32xf32> to vector<1x8x32xf32>
    %5 = vector.broadcast %4 : vector<1x8x32xf32> to vector<2x8x32xf32>
    %6 = arith.addf %1, %5 : vector<2x8x32xf32>
    %c0_4 = arith.constant 0 : index
    %c0_5 = arith.constant 0 : index
    %c0_6 = arith.constant 0 : index
    %7 = vector.load %arg3[%c0_4, %c0_5, %c0_6] : memref<2x8x32xbf16, #tpu.memory_space<vmem>>, vector<2x8x32xbf16>
    %8 = arith.extf %7 : vector<2x8x32xbf16> to vector<2x8x32xf32>
    %9 = arith.addf %6, %8 : vector<2x8x32xf32>
    %c0_7 = arith.constant 0 : index
    %c0_8 = arith.constant 0 : index
    %10 = vector.load %arg4[%c0_7, %c0_8] : memref<1x32xf32, #tpu.memory_space<vmem>>, vector<1x32xf32>
    %c0_9 = arith.constant 0 : index
    %c0_10 = arith.constant 0 : index
    %11 = vector.load %arg5[%c0_9, %c0_10] : memref<1x32xf32, #tpu.memory_space<vmem>>, vector<1x32xf32>
    %cst = arith.constant dense<0.000000e+00> : vector<2x8xf32>
    %12 = vector.multi_reduction <add>, %9, %cst [2] : vector<2x8x32xf32> to vector<2x8xf32>
    %13 = vector.shape_cast %12 : vector<2x8xf32> to vector<2x8x1xf32>
    %cst_11 = arith.constant 3.200000e+01 : f32
    %14 = vector.broadcast %cst_11 : f32 to vector<2x8x1xf32>
    %15 = arith.divf %13, %14 : vector<2x8x1xf32>
    %16 = vector.broadcast %15 : vector<2x8x1xf32> to vector<2x8x32xf32>
    %17 = arith.subf %9, %16 : vector<2x8x32xf32>
    %18 = arith.mulf %17, %17 : vector<2x8x32xf32>
    %cst_12 = arith.constant dense<0.000000e+00> : vector<2x8xf32>
    %19 = vector.multi_reduction <add>, %18, %cst_12 [2] : vector<2x8x32xf32> to vector<2x8xf32>
    %20 = vector.shape_cast %19 : vector<2x8xf32> to vector<2x8x1xf32>
    %cst_13 = arith.constant 3.200000e+01 : f32
    %21 = vector.broadcast %cst_13 : f32 to vector<2x8x1xf32>
    %22 = arith.divf %20, %21 : vector<2x8x1xf32>
    %23 = vector.broadcast %15 : vector<2x8x1xf32> to vector<2x8x32xf32>
    %24 = arith.subf %9, %23 : vector<2x8x32xf32>
    %cst_14 = arith.constant 9.99999974E-6 : f32
    %25 = vector.broadcast %cst_14 : f32 to vector<2x8x1xf32>
    %26 = arith.addf %22, %25 : vector<2x8x1xf32>
    %27 = math.rsqrt %26 : vector<2x8x1xf32>
    %28 = vector.broadcast %27 : vector<2x8x1xf32> to vector<2x8x32xf32>
    %29 = arith.mulf %24, %28 : vector<2x8x32xf32>
    %30 = vector.shape_cast %10 : vector<1x32xf32> to vector<1x1x32xf32>
    %31 = vector.broadcast %30 : vector<1x1x32xf32> to vector<2x8x32xf32>
    %32 = arith.mulf %29, %31 : vector<2x8x32xf32>
    %33 = vector.shape_cast %11 : vector<1x32xf32> to vector<1x1x32xf32>
    %34 = vector.broadcast %33 : vector<1x1x32xf32> to vector<2x8x32xf32>
    %35 = arith.addf %32, %34 : vector<2x8x32xf32>
    %36 = arith.truncf %35 : vector<2x8x32xf32> to vector<2x8x32xbf16>
    %c0_15 = arith.constant 0 : index
    %c0_16 = arith.constant 0 : index
    %c0_17 = arith.constant 0 : index
    %37 = vector.load %arg6[%c0_15, %c0_16, %c0_17] : memref<2x8x32xbf16, #tpu.memory_space<vmem>>, vector<2x8x32xbf16>
    tpu.vector_store %arg6[%c0_15, %c0_16, %c0_17], %36 {strides = array<i32>} : memref<2x8x32xbf16, #tpu.memory_space<vmem>>, vector<2x8x32xbf16>,
    return
  }
  func.func @transform_0(%arg0: i32) -> (i32, i32, i32) {
    %c0_i32 = arith.constant 0 : i32
    %c0_i32_0 = arith.constant 0 : i32
    %c0_i32_1 = arith.constant 0 : i32
    return %arg0, %c0_i32, %c0_i32_0 : i32, i32, i32
  }
  func.func @transform_1(%arg0: i32) -> (i32, i32) {
    %c0_i32 = arith.constant 0 : i32
    %c0_i32_0 = arith.constant 0 : i32
    %c0_i32_1 = arith.constant 0 : i32
    return %c0_i32, %c0_i32_0 : i32, i32
  }
  func.func @transform_2(%arg0: i32) -> (i32, i32, i32) {
    %c0_i32 = arith.constant 0 : i32
    %c0_i32_0 = arith.constant 0 : i32
    %c0_i32_1 = arith.constant 0 : i32
    return %arg0, %c0_i32, %c0_i32_0 : i32, i32, i32
  }
  func.func @transform_3(%arg0: i32) -> (i32, i32) {
    %c0_i32 = arith.constant 0 : i32
    %c0_i32_0 = arith.constant 0 : i32
    %c0_i32_1 = arith.constant 0 : i32
    return %c0_i32, %c0_i32_0 : i32, i32
  }
  func.func @transform_4(%arg0: i32) -> (i32, i32) {
    %c0_i32 = arith.constant 0 : i32
    %c0_i32_0 = arith.constant 0 : i32
    %c0_i32_1 = arith.constant 0 : i32
    return %c0_i32, %c0_i32_0 : i32, i32
  }
  func.func @transform_5(%arg0: i32) -> (i32, i32, i32) {
    %c0_i32 = arith.constant 0 : i32
    %c0_i32_0 = arith.constant 0 : i32
    %c0_i32_1 = arith.constant 0 : i32
    return %arg0, %c0_i32, %c0_i32_0 : i32, i32, i32
  }
}

</mosaic_0001>

<llo_original>
// kernel: tpu_custom_call.1
$region0: #{tpu_custom_call.1}
  #allocation0 [shape = 'u32[]', space=smem, size = 0x4, offset = 0x4, fixed_abs, tag = 'smem constant byte address 0x4 - core index']
  #allocation1 [shape = 'u32[144,128]{1,0:T(1,128)}', space=vmem, size = 0x12000, scoped, tag = 'internal scratch']
  %s0 = inlined_call_operand.hbm [shape: bf16[2,8,32], index: 0, kind: input, shape index: {}]
  %s1 = inlined_call_operand.hbm [shape: bf16[8,32], index: 1, kind: input, shape index: {}]
  %s2 = inlined_call_operand.hbm [shape: bf16[2,8,32], index: 2, kind: input, shape index: {}]
  %s3 = inlined_call_operand.vmem [shape: f32[1,32], index: 3, kind: input, shape index: {}]
  %s4 = inlined_call_operand.vmem [shape: f32[1,32], index: 4, kind: input, shape index: {}]
  %s5 = inlined_call_operand.hbm [shape: bf16[2,8,32], index: 5, kind: output, shape index: {}]
  %s6 = sld [smem:[#allocation0]]
  $region42: #{tpu_custom_call.1} parent=0
    _
  %s8 = ssub.s32 1, %s6
  %s9 = scalar_select 0, %s8, %s6
  $region1: #{tpu_custom_call.1} parent=0
    #allocation2 [shape = 'u8[4096]{0}', space=vmem, size = 0x1000, scoped, tag = 'input window, operand 0, single buffered']
    #allocation3 [shape = 's32[1]{0}', space=sflag, size = 0x4, scoped, tag = 'scoped memory for tpu_custom_call.1']
    #allocation4 [shape = 's32[1]{0}', space=sflag, size = 0x4, scoped, tag = 'scoped memory for tpu_custom_call.1']
    #allocation5 [shape = 'u8[2048]{0}', space=vmem, size = 0x800, scoped, tag = 'input window, operand 1, single buffered']
    #allocation6 [shape = 's32[1]{0}', space=sflag, size = 0x4, scoped, tag = 'scoped memory for tpu_custom_call.1']
    #allocation7 [shape = 'u8[4096]{0}', space=vmem, size = 0x1000, scoped, tag = 'input window, operand 2, single buffered']
    #allocation8 [shape = 'u8[4096]{0}', space=vmem, size = 0x1000, scoped, tag = 'output window, operand 0, single buffered']
    %10 = vsyncpa [#allocation3], 0
    %11 = vsyncpa [#allocation6], 0
    %12 = vsyncpa [#allocation4], 0
    // Predicated region
    $region2: #{tpu_custom_call.1} parent=1 // pred_check
      _
    $region3: #{tpu_custom_call.1} parent=1 // pred_check_branch
      %14 = sbr.rel (0) target = $region5
    $region4: #{tpu_custom_call.1} parent=1 // pred_region
      %s16 = ssub.s32 128, 128
      %17 = vsyncadd [#allocation3], %s16
      %s18 = sshll.u32 [#allocation2], 4
      %s19 = int_to_ptr.vmem [resolvable:$true] %s18
      %24 = dma.hbm_to_vmem [thread:$0]  %s0, 128, %s19, [#allocation3], 64, 64, 4
    $region5: #{tpu_custom_call.1} parent=1 // pred_fallthru
      _
    // Predicated region
    $region6: #{tpu_custom_call.1} parent=1 // pred_check
      _
    $region7: #{tpu_custom_call.1} parent=1 // pred_check_branch
      %26 = sbr.rel (0) target = $region9
    $region8: #{tpu_custom_call.1} parent=1 // pred_region
      %s28 = ssub.s32 64, 64
      %29 = vsyncadd [#allocation6], %s28
      %s31 = sshll.u32 [#allocation5], 4
      %s32 = int_to_ptr.vmem [resolvable:$true] %s31
      %34 = dma.hbm_to_vmem [thread:$0]  %s1, 64, %s32, [#allocation6]
    $region9: #{tpu_custom_call.1} parent=1 // pred_fallthru
      _
    // Predicated region
    $region10: #{tpu_custom_call.1} parent=1 // pred_check
      _
    $region11: #{tpu_custom_call.1} parent=1 // pred_check_branch
      %36 = sbr.rel (0) target = $region13
    $region12: #{tpu_custom_call.1} parent=1 // pred_region
      %s38 = ssub.s32 128, 128
      %39 = vsyncadd [#allocation6], %s38
      %s40 = sshll.u32 [#allocation7], 4
      %s41 = int_to_ptr.vmem [resolvable:$true] %s40
      %46 = dma.hbm_to_vmem [thread:$0]  %s2, 128, %s41, [#allocation6], 64, 64, 4
    $region13: #{tpu_custom_call.1} parent=1 // pred_fallthru
      _
    // Predicated region
    $region14: #{tpu_custom_call.1} parent=1 // pred_check
      _
    $region15: #{tpu_custom_call.1} parent=1 // pred_check_branch
      %48 = sbr.rel (0) target = $region17
    $region16: #{tpu_custom_call.1} parent=1 // pred_region
      _
    $region17: #{tpu_custom_call.1} parent=1 // pred_fallthru
      _
    // Predicated region
    $region18: #{tpu_custom_call.1} parent=1 // pred_check
      _
    $region19: #{tpu_custom_call.1} parent=1 // pred_check_branch
      %50 = sbr.rel (0) target = $region21
    $region20: #{tpu_custom_call.1} parent=1 // pred_region
      _
    $region21: #{tpu_custom_call.1} parent=1 // pred_fallthru
      _
    // Predicated region
    $region22: #{tpu_custom_call.1} parent=1 // pred_check
      _
    $region23: #{tpu_custom_call.1} parent=1 // pred_check_branch
      %52 = sbr.rel (0) target = $region25
    $region24: #{tpu_custom_call.1} parent=1 // pred_region
      %53 = dma.done [#allocation3], 128
    $region25: #{tpu_custom_call.1} parent=1 // pred_fallthru
      _
    // Predicated region
    $region26: #{tpu_custom_call.1} parent=1 // pred_check
      _
    $region27: #{tpu_custom_call.1} parent=1 // pred_check_branch
      %55 = sbr.rel (0) target = $region29
    $region28: #{tpu_custom_call.1} parent=1 // pred_region
      %56 = dma.done [#allocation6], 64
    $region29: #{tpu_custom_call.1} parent=1 // pred_fallthru
      _
    // Predicated region
    $region30: #{tpu_custom_call.1} parent=1 // pred_check
      _
    $region31: #{tpu_custom_call.1} parent=1 // pred_check_branch
      %58 = sbr.rel (0) target = $region33
    $region32: #{tpu_custom_call.1} parent=1 // pred_region
      %59 = dma.done [#allocation6], 128
    $region33: #{tpu_custom_call.1} parent=1 // pred_fallthru
      _
    %v60 = vld [vmem:[#allocation2] sm:$0xf]
    %v61 = vld [vmem:[#allocation2 + $0x4] sm:$0xf]
    %v62 = vunpack.c.l.bf16 %v60
    %v63 = vunpack.c.l.bf16 %v61
    %v64 = vld [vmem:[#allocation5] sm:$0xf]
    %v65 = vunpack.c.l.bf16 %v64
    %v66 = vadd.f32 %v62, %v65
    %v67 = vadd.f32 %v63, %v65
    %v68 = vld [vmem:[#allocation7] sm:$0xf]
    %v69 = vld [vmem:[#allocation7 + $0x4] sm:$0xf]
    %v70 = vunpack.c.l.bf16 %v68
    %v71 = vunpack.c.l.bf16 %v69
    %v72 = vadd.f32 %v66, %v70
    %v73 = vadd.f32 %v67, %v71
    %v74 = vld [vmem:[%s3] sm:$0x1]
    %v75 = vld [vmem:[%s4] sm:$0x1]
    %vm76 = vcmask 261120
    %v77 = vsel %vm76, %v72, 0.0
    %78 = vadd.xlane.f32.xlu0 %v77
    %v79 = vpop.xlane.xlu0 %78
    %v80 = vsel %vm76, %v73, 0.0
    %81 = vadd.xlane.f32.xlu0 %v80
    %v82 = vpop.xlane.xlu0 %81
    %v83 = vrcp.pop 32.0
    %v84 = vmul.f32 %v79, %v83
    %v85 = vmul.f32 %v82, %v83
    %v86 = vsub.f32 %v72, %v84
    %v87 = vsub.f32 %v73, %v85
    %v88 = vmul.f32 %v86, %v86
    %v89 = vmul.f32 %v87, %v87
    %v90 = vsel %vm76, %v88, 0.0
    %91 = vadd.xlane.f32.xlu0 %v90
    %v92 = vpop.xlane.xlu0 %91
    %v93 = vsel %vm76, %v89, 0.0
    %94 = vadd.xlane.f32.xlu0 %v93
    %v95 = vpop.xlane.xlu0 %94
    %v96 = vmul.f32 %v92, %v83
    %v97 = vmul.f32 %v95, %v83
    %v98 = vadd.f32 %v96, 1e-05
    %v99 = vadd.f32 %v97, 1e-05
    %v100 = vrsqrt.pop %v98
    %v101 = vrsqrt.pop %v99
    %v102 = vmul.f32 %v86, %v100
    %v103 = vmul.f32 %v87, %v101
    %v105 = vlaneseq
    %v106 = vshrl.u32 %v105, 7
    %v107 = vsub.s32 0, %v106
    %v108 = vrot.slane %v74, %v107
    %v110 = vmul.f32 %v102, %v108
    %v111 = vmul.f32 %v103, %v108
    %v113 = vlaneseq
    %v114 = vshrl.u32 %v113, 7
    %v115 = vsub.s32 0, %v114
    %v116 = vrot.slane %v75, %v115
    %v118 = vadd.f32 %v110, %v116
    %v119 = vadd.f32 %v111, %v116
    %v120 = vpack.c.bf16 %v118, %v118
    %v121 = vpack.c.bf16 %v119, %v119
    %vm122 = vcmask 257024
    %123 = vst.msk [vmem:[#allocation8] sm:$0xf] %vm122, %v120
    %124 = vst.msk [vmem:[#allocation8 + $0x4] sm:$0xf] %vm122, %v121
    // Predicated region
    $region34: #{tpu_custom_call.1} parent=1 // pred_check
      _
    $region35: #{tpu_custom_call.1} parent=1 // pred_check_branch
      %126 = sbr.rel (0) target = $region37
    $region36: #{tpu_custom_call.1} parent=1 // pred_region
      %s128 = ssub.s32 128, 128
      %129 = vsyncadd [#allocation4], %s128
      %s130 = sshll.u32 [#allocation8], 4
      %s131 = int_to_ptr.vmem [resolvable:$true] %s130
      %136 = dma.vmem_to_hbm [thread:$0]  %s131, 128, %s5, [#allocation4], 64, 64, 4
    $region37: #{tpu_custom_call.1} parent=1 // pred_fallthru
      _
    // Predicated region
    $region38: #{tpu_custom_call.1} parent=1 // pred_check
      _
    $region39: #{tpu_custom_call.1} parent=1 // pred_check_branch
      %138 = sbr.rel (0) target = $region41
    $region40: #{tpu_custom_call.1} parent=1 // pred_region
      %139 = dma.done [#allocation4], 128
    $region41: #{tpu_custom_call.1} parent=1 // pred_fallthru
      _
    %140 = vsyncpa [#allocation3], 1
    %141 = vsyncpa [#allocation6], 1
    %142 = vsyncpa [#allocation4], 1

</llo_original>
